<compile_context>
chip_gen: v7x
topology: tpu7x:2x2x1
jax: 0.10.0
libtpu: 0.0.40
codegen_flags: <defaults>
</compile_context>

<pallas_src>
import functools

import jax
import jax.numpy as jnp
from jax.experimental import pallas as pl
from jax.experimental.pallas import tpu as pltpu


def _widedeep_kernel(n_hidden, dense_ref, embeds_ref, w_wide_ref, b_wide_ref,
                     w1e_ref, w1d_ref, b1_ref, *rest):
    """Fused wide + deep forward in (features, batch) layout.

    rest = [w2, b2, ..., w_{n_hidden}, b_{n_hidden}, w_deep, b_deep, out_ref]
    Shapes (TB = batch tile on the lane axis):
      dense_ref : (n_dense, TB)    embeds_ref: (S*E, TB)
      w_wide_ref: (n_dense, 1)     b_wide_ref: (1, 1)  [SMEM]
      w1e_ref   : (h1, S*E)        w1d_ref   : (h1, n_dense)
      b1_ref    : (h1, 1)
      w_i       : (h_i, h_{i-1})   b_i       : (h_i, 1)
      w_deep    : (h_last, 1)      b_deep    : (1, 1)  [SMEM]
      out_ref   : (1, TB)
    """
    layer_refs = rest[: 2 * (n_hidden - 1)]
    w_deep_ref = rest[2 * (n_hidden - 1)]
    b_deep_ref = rest[2 * (n_hidden - 1) + 1]
    out_ref = rest[2 * (n_hidden - 1) + 2]

    dense = dense_ref[...]            # (n_dense, TB)
    embeds = embeds_ref[...]          # (S*E, TB)

    # ---- deep branch ----
    # Layer 1: torch.cat([sparse_embeds, dense]) @ W1 rewritten as two dots on
    # tiles that are already VMEM-resident (no concat HBM round-trip, no
    # duplicate DMA of dense_input).
    x = (jnp.dot(w1e_ref[...], embeds, preferred_element_type=jnp.float32)
         + jnp.dot(w1d_ref[...], dense, preferred_element_type=jnp.float32)
         + b1_ref[...])
    x = jnp.maximum(x, 0.0)           # ReLU

    for i in range(n_hidden - 1):
        w = layer_refs[2 * i][...]
        b = layer_refs[2 * i + 1][...]
        x = jnp.dot(w, x, preferred_element_type=jnp.float32) + b
        x = jnp.maximum(x, 0.0)
    # TODO(synk): dropout is eval-mode identity and is omitted.

    # Final deep linear has out-dim 1: VPU multiply + sublane reduce instead
    # of an MXU push with N=1.
    deep = jnp.sum(x * w_deep_ref[...], axis=0, keepdims=True) + b_deep_ref[0, 0]

    # Wide branch: relu(Linear(dense)) — also out-dim 1, same trick.
    wide = jnp.sum(dense * w_wide_ref[...], axis=0, keepdims=True) + b_wide_ref[0, 0]
    wide = jnp.maximum(wide, 0.0)

    out_ref[...] = jax.nn.sigmoid(0.5 * (wide + deep))


def widedeep_forward(dense_input, sparse_input, params, *, batch_tile=None):
    """dense_input: (B, n_dense) f32, sparse_input: (B, n_sparse) i32 -> (B,) f32."""
    B, n_dense = dense_input.shape
    embed_dim = params["embed_tables"][0].shape[1]
    se = len(params["embed_tables"]) * embed_dim

    # --- glue: data-dependent embedding gather stays outside the kernel ---
    # TODO(synk): at production table sizes, keep tables in HBM (pl.ANY) and
    # gather rows in-kernel with scalar-prefetched indices + make_async_copy.
    embeds = [jnp.take(tbl, sparse_input[:, i], axis=0)
              for i, tbl in enumerate(params["embed_tables"])]
    embeds_t = jnp.concatenate(embeds, axis=1).T          # (S*E, B) lane=batch
    dense_t = dense_input.T                               # (n_dense, B)

    deep_ws, deep_bs = params["deep_ws"], params["deep_bs"]
    n_hidden = len(deep_ws)

    w1 = deep_ws[0]                                       # (h1, S*E + n_dense)
    w1e, w1d = w1[:, :se], w1[:, se:]
    b1 = deep_bs[0].reshape(-1, 1)

    operands = [dense_t, embeds_t,
                params["w_wide"].T,                       # (n_dense, 1)
                params["b_wide"].reshape(1, 1),           # SMEM scalar
                w1e, w1d, b1]
    for w, b in zip(deep_ws[1:], deep_bs[1:]):
        operands += [w, b.reshape(-1, 1)]
    operands += [params["w_deep"].T,                      # (h_last, 1)
                 params["b_deep"].reshape(1, 1)]          # SMEM scalar

    # Batch tile on the lane axis: full batch when small, 256-wide tiles for
    # real batch sizes so v7x's two TensorCores both get work.
    if batch_tile is None:
        batch_tile = 256 if (B >= 512 and B % 256 == 0) else B
    assert B % batch_tile == 0
    assert batch_tile == B or batch_tile % 128 == 0
    grid = (B // batch_tile,)

    def _rep(shape):                 # weight / bias resident across the grid
        return pl.BlockSpec(shape, lambda i: (0, 0),
                            memory_space=pltpu.MemorySpace.VMEM)

    def _smem_scalar():
        return pl.BlockSpec((1, 1), lambda i: (0, 0),
                            memory_space=pltpu.MemorySpace.SMEM)

    def _act(rows):                  # (features, TB) activation slab
        return pl.BlockSpec((rows, batch_tile), lambda i: (0, i),
                            memory_space=pltpu.MemorySpace.VMEM)

    in_specs = [_act(n_dense), _act(se),
                _rep(operands[2].shape), _smem_scalar(),
                _rep(w1e.shape), _rep(w1d.shape), _rep(b1.shape)]
    for w, b in zip(deep_ws[1:], deep_bs[1:]):
        in_specs += [_rep(w.shape), _rep((b.shape[0], 1))]
    in_specs += [_rep(operands[-2].shape), _smem_scalar()]

    out = pl.pallas_call(
        functools.partial(_widedeep_kernel, n_hidden),
        grid=grid,
        out_shape=jax.ShapeDtypeStruct((1, B), jnp.float32),
        in_specs=in_specs,
        out_specs=pl.BlockSpec((1, batch_tile), lambda i: (0, i),
                               memory_space=pltpu.MemorySpace.VMEM),
        compiler_params=pltpu.CompilerParams(
            dimension_semantics=("parallel",),
            vmem_limit_bytes=32 * 1024 * 1024),
    )(*operands)
    return out[0]   # (B,) — matches torch's out.squeeze()


def init_params(key, n_dense, sparse_feat_nums, embed_dim, hidden_units):
    """Synthetic params with PyTorch Linear orientation: weight (out, in)."""
    keys = jax.random.split(key, 64)
    ki = iter(range(64))

    embed_tables = [
        0.1 * jax.random.normal(keys[next(ki)], (n, embed_dim), jnp.float32)
        for n in sparse_feat_nums
    ]

    # wide_linear: Linear(n_dense, 1)
    w_wide = 0.1 * jax.random.normal(keys[next(ki)], (1, n_dense), jnp.float32)
    b_wide = 0.1 * jax.random.normal(keys[next(ki)], (1,), jnp.float32)

    # DNN: dims = [n_dense + S*E] + hidden_units
    d_in = n_dense + len(sparse_feat_nums) * embed_dim
    dims = [d_in] + list(hidden_units)
    deep_ws, deep_bs = [], []
    for a, b in zip(dims[:-1], dims[1:]):
        deep_ws.append(0.1 * jax.random.normal(keys[next(ki)], (b, a), jnp.float32))
        deep_bs.append(0.1 * jax.random.normal(keys[next(ki)], (b,), jnp.float32))

    # deep_linear: Linear(hidden_units[-1], 1)
    w_deep = 0.1 * jax.random.normal(keys[next(ki)], (1, dims[-1]), jnp.float32)
    b_deep = 0.1 * jax.random.normal(keys[next(ki)], (1,), jnp.float32)

    return dict(embed_tables=embed_tables, w_wide=w_wide, b_wide=b_wide,
                deep_ws=deep_ws, deep_bs=deep_bs, w_deep=w_deep, b_deep=b_deep)


def reference_forward(dense_input, sparse_input, params):
    """Pure-JAX reference mirroring the PyTorch semantics (eval mode)."""
    embeds = [jnp.take(tbl, sparse_input[:, i], axis=0)
              for i, tbl in enumerate(params["embed_tables"])]
    dnn_in = jnp.concatenate(embeds + [dense_input], axis=1)
    wide = jax.nn.relu(dense_input @ params["w_wide"].T + params["b_wide"])
    x = dnn_in
    for w, b in zip(params["deep_ws"], params["deep_bs"]):
        x = jax.nn.relu(x @ w.T + b)
    deep = x @ params["w_deep"].T + params["b_deep"]
    return jax.nn.sigmoid(0.5 * (wide + deep))[:, 0]


if __name__ == "__main__":
    # Small synthetic config consistent with the module.
    B = 8
    n_dense = 8
    sparse_feat_nums = [10, 20, 30, 40]   # 4 sparse features
    embed_dim = 8
    hidden_units = [32, 16]
    # dropout = 0.2  (identity in eval mode -> omitted)

    key = jax.random.PRNGKey(0)
    kp, kd, ks = jax.random.split(key, 3)

    params = init_params(kp, n_dense, sparse_feat_nums, embed_dim, hidden_units)

    dense_input = jax.random.normal(kd, (B, n_dense), jnp.float32)
    sparse_input = jnp.stack(
        [jax.random.randint(jax.random.fold_in(ks, i), (B,), 0, n)
         for i, n in enumerate(sparse_feat_nums)], axis=1).astype(jnp.int32)

    out = widedeep_forward(dense_input, sparse_input, params)
    out = jax.block_until_ready(out)

    ref = reference_forward(dense_input, sparse_input, params)
    assert out.shape == (B,)
    assert jnp.allclose(out, ref, atol=1e-5, rtol=1e-5)

    print("KERNEL_OK")
</pallas_src>

<mosaic_0001>
module attributes {stable_mosaic.version = 11 : i64} {
  func.func @_widedeep_kernel(%arg0: i32, %arg1: memref<8x8xf32, #tpu.memory_space<vmem>>, %arg2: memref<32x8xf32, #tpu.memory_space<vmem>>, %arg3: memref<8x1xf32, #tpu.memory_space<vmem>>, %arg4: memref<1x1xf32, #tpu.memory_space<smem>>, %arg5: memref<32x32xf32, #tpu.memory_space<vmem>>, %arg6: memref<32x8xf32, #tpu.memory_space<vmem>>, %arg7: memref<32x1xf32, #tpu.memory_space<vmem>>, %arg8: memref<16x32xf32, #tpu.memory_space<vmem>>, %arg9: memref<16x1xf32, #tpu.memory_space<vmem>>, %arg10: memref<16x1xf32, #tpu.memory_space<vmem>>, %arg11: memref<1x1xf32, #tpu.memory_space<smem>>, %arg12: memref<1x8xf32, #tpu.memory_space<vmem>>) attributes {dimension_semantics = [#tpu.dimension_semantics<parallel>], iteration_bounds = array<i64: 1>, scalar_prefetch = 0 : i64, scratch_operands = 0 : i64, tpu.core_type = #tpu.core_type<tc>, window_params = [{transform_indices = @transform_0, window_bounds = array<i64: 8, 8>}, {transform_indices = @transform_1, window_bounds = array<i64: 32, 8>}, {pipeline_mode = #tpu.pipeline_mode<synchronous>, transform_indices = @transform_2, window_bounds = array<i64: 8, 1>}, {transform_indices = @transform_3, window_bounds = array<i64: 1, 1>}, {pipeline_mode = #tpu.pipeline_mode<synchronous>, transform_indices = @transform_4, window_bounds = array<i64: 32, 32>}, {pipeline_mode = #tpu.pipeline_mode<synchronous>, transform_indices = @transform_5, window_bounds = array<i64: 32, 8>}, {pipeline_mode = #tpu.pipeline_mode<synchronous>, transform_indices = @transform_6, window_bounds = array<i64: 32, 1>}, {pipeline_mode = #tpu.pipeline_mode<synchronous>, transform_indices = @transform_7, window_bounds = array<i64: 16, 32>}, {pipeline_mode = #tpu.pipeline_mode<synchronous>, transform_indices = @transform_8, window_bounds = array<i64: 16, 1>}, {pipeline_mode = #tpu.pipeline_mode<synchronous>, transform_indices = @transform_9, window_bounds = array<i64: 16, 1>}, {transform_indices = @transform_10, window_bounds = array<i64: 1, 1>}, {transform_indices = @transform_11, window_bounds = array<i64: 1, 8>}]} {
    %c0 = arith.constant 0 : index
    %c0_0 = arith.constant 0 : index
    %0 = vector.load %arg1[%c0, %c0_0] : memref<8x8xf32, #tpu.memory_space<vmem>>, vector<8x8xf32>
    %c0_1 = arith.constant 0 : index
    %c0_2 = arith.constant 0 : index
    %1 = vector.load %arg2[%c0_1, %c0_2] : memref<32x8xf32, #tpu.memory_space<vmem>>, vector<32x8xf32>
    %c0_3 = arith.constant 0 : index
    %c0_4 = arith.constant 0 : index
    %2 = vector.load %arg5[%c0_3, %c0_4] : memref<32x32xf32, #tpu.memory_space<vmem>>, vector<32x32xf32>
    %cst = arith.constant dense<0.000000e+00> : vector<32x8xf32>
    %3 = tpu.matmul %2, %1, %cst {dimension_numbers = #tpu.dot_dimension_numbers<[1], [0], [0], [1], [0, 0, 1, 1], [], []>} : vector<32x32xf32>, vector<32x8xf32>, vector<32x8xf32> -> vector<32x8xf32>
    %c0_5 = arith.constant 0 : index
    %c0_6 = arith.constant 0 : index
    %4 = vector.load %arg6[%c0_5, %c0_6] : memref<32x8xf32, #tpu.memory_space<vmem>>, vector<32x8xf32>
    %cst_7 = arith.constant dense<0.000000e+00> : vector<32x8xf32>
    %5 = tpu.matmul %4, %0, %cst_7 {dimension_numbers = #tpu.dot_dimension_numbers<[1], [0], [0], [1], [0, 0, 1, 1], [], []>} : vector<32x8xf32>, vector<8x8xf32>, vector<32x8xf32> -> vector<32x8xf32>
    %6 = arith.addf %3, %5 : vector<32x8xf32>
    %c0_8 = arith.constant 0 : index
    %c0_9 = arith.constant 0 : index
    %7 = vector.load %arg7[%c0_8, %c0_9] : memref<32x1xf32, #tpu.memory_space<vmem>>, vector<32x1xf32>
    %8 = vector.broadcast %7 : vector<32x1xf32> to vector<32x8xf32>
    %9 = arith.addf %6, %8 : vector<32x8xf32>
    %cst_10 = arith.constant 0.000000e+00 : f32
    %10 = vector.broadcast %cst_10 : f32 to vector<32x8xf32>
    %11 = arith.maximumf %9, %10 : vector<32x8xf32>
    %c0_11 = arith.constant 0 : index
    %c0_12 = arith.constant 0 : index
    %12 = vector.load %arg8[%c0_11, %c0_12] : memref<16x32xf32, #tpu.memory_space<vmem>>, vector<16x32xf32>
    %c0_13 = arith.constant 0 : index
    %c0_14 = arith.constant 0 : index
    %13 = vector.load %arg9[%c0_13, %c0_14] : memref<16x1xf32, #tpu.memory_space<vmem>>, vector<16x1xf32>
    %cst_15 = arith.constant dense<0.000000e+00> : vector<16x8xf32>
    %14 = tpu.matmul %12, %11, %cst_15 {dimension_numbers = #tpu.dot_dimension_numbers<[1], [0], [0], [1], [0, 0, 1, 1], [], []>} : vector<16x32xf32>, vector<32x8xf32>, vector<16x8xf32> -> vector<16x8xf32>
    %15 = vector.broadcast %13 : vector<16x1xf32> to vector<16x8xf32>
    %16 = arith.addf %14, %15 : vector<16x8xf32>
    %cst_16 = arith.constant 0.000000e+00 : f32
    %17 = vector.broadcast %cst_16 : f32 to vector<16x8xf32>
    %18 = arith.maximumf %16, %17 : vector<16x8xf32>
    %c0_17 = arith.constant 0 : index
    %c0_18 = arith.constant 0 : index
    %19 = vector.load %arg10[%c0_17, %c0_18] : memref<16x1xf32, #tpu.memory_space<vmem>>, vector<16x1xf32>
    %20 = vector.broadcast %19 : vector<16x1xf32> to vector<16x8xf32>
    %21 = arith.mulf %18, %20 : vector<16x8xf32>
    %cst_19 = arith.constant dense<0.000000e+00> : vector<8xf32>
    %22 = vector.multi_reduction <add>, %21, %cst_19 [0] : vector<16x8xf32> to vector<8xf32>
    %23 = vector.shape_cast %22 : vector<8xf32> to vector<1x8xf32>
    %c0_20 = arith.constant 0 : index
    %c0_21 = arith.constant 0 : index
    %24 = memref.load %arg11[%c0_20, %c0_21] : memref<1x1xf32, #tpu.memory_space<smem>>
    %25 = vector.broadcast %24 : f32 to vector<1x8xf32>
    %26 = arith.addf %23, %25 : vector<1x8xf32>
    %c0_22 = arith.constant 0 : index
    %c0_23 = arith.constant 0 : index
    %27 = vector.load %arg3[%c0_22, %c0_23] : memref<8x1xf32, #tpu.memory_space<vmem>>, vector<8x1xf32>
    %28 = vector.broadcast %27 : vector<8x1xf32> to vector<8x8xf32>
    %29 = arith.mulf %0, %28 : vector<8x8xf32>
    %cst_24 = arith.constant dense<0.000000e+00> : vector<8xf32>
    %30 = vector.multi_reduction <add>, %29, %cst_24 [0] : vector<8x8xf32> to vector<8xf32>
    %31 = vector.shape_cast %30 : vector<8xf32> to vector<1x8xf32>
    %c0_25 = arith.constant 0 : index
    %c0_26 = arith.constant 0 : index
    %32 = memref.load %arg4[%c0_25, %c0_26] : memref<1x1xf32, #tpu.memory_space<smem>>
    %33 = vector.broadcast %32 : f32 to vector<1x8xf32>
    %34 = arith.addf %31, %33 : vector<1x8xf32>
    %cst_27 = arith.constant 0.000000e+00 : f32
    %35 = vector.broadcast %cst_27 : f32 to vector<1x8xf32>
    %36 = arith.maximumf %34, %35 : vector<1x8xf32>
    %37 = arith.addf %36, %26 : vector<1x8xf32>
    %cst_28 = arith.constant 5.000000e-01 : f32
    %38 = vector.broadcast %cst_28 : f32 to vector<1x8xf32>
    %39 = arith.mulf %38, %37 : vector<1x8xf32>
    %40 = arith.negf %39 : vector<1x8xf32>
    %41 = math.exp %40 : vector<1x8xf32>
    %cst_29 = arith.constant 1.000000e+00 : f32
    %42 = vector.broadcast %cst_29 : f32 to vector<1x8xf32>
    %43 = arith.addf %42, %41 : vector<1x8xf32>
    %44 = arith.divf %42, %43 : vector<1x8xf32>
    %c0_30 = arith.constant 0 : index
    %c0_31 = arith.constant 0 : index
    %45 = vector.load %arg12[%c0_30, %c0_31] : memref<1x8xf32, #tpu.memory_space<vmem>>, vector<1x8xf32>
    tpu.vector_store %arg12[%c0_30, %c0_31], %44 {strides = array<i32>} : memref<1x8xf32, #tpu.memory_space<vmem>>, vector<1x8xf32>,
    return
  }
  func.func @transform_0(%arg0: i32) -> (i32, i32) {
    %c0_i32 = arith.constant 0 : i32
    %c0_i32_0 = arith.constant 0 : i32
    return %c0_i32, %arg0 : i32, i32
  }
  func.func @transform_1(%arg0: i32) -> (i32, i32) {
    %c0_i32 = arith.constant 0 : i32
    %c0_i32_0 = arith.constant 0 : i32
    return %c0_i32, %arg0 : i32, i32
  }
  func.func @transform_2(%arg0: i32) -> (i32, i32) {
    %c0_i32 = arith.constant 0 : i32
    %c0_i32_0 = arith.constant 0 : i32
    %c0_i32_1 = arith.constant 0 : i32
    return %c0_i32, %c0_i32_0 : i32, i32
  }
  func.func @transform_3(%arg0: i32) -> (i32, i32) {
    %c0_i32 = arith.constant 0 : i32
    %c0_i32_0 = arith.constant 0 : i32
    %c0_i32_1 = arith.constant 0 : i32
    return %c0_i32, %c0_i32_0 : i32, i32
  }
  func.func @transform_4(%arg0: i32) -> (i32, i32) {
    %c0_i32 = arith.constant 0 : i32
    %c0_i32_0 = arith.constant 0 : i32
    %c0_i32_1 = arith.constant 0 : i32
    return %c0_i32, %c0_i32_0 : i32, i32
  }
  func.func @transform_5(%arg0: i32) -> (i32, i32) {
    %c0_i32 = arith.constant 0 : i32
    %c0_i32_0 = arith.constant 0 : i32
    %c0_i32_1 = arith.constant 0 : i32
    return %c0_i32, %c0_i32_0 : i32, i32
  }
  func.func @transform_6(%arg0: i32) -> (i32, i32) {
    %c0_i32 = arith.constant 0 : i32
    %c0_i32_0 = arith.constant 0 : i32
    %c0_i32_1 = arith.constant 0 : i32
    return %c0_i32, %c0_i32_0 : i32, i32
  }
  func.func @transform_7(%arg0: i32) -> (i32, i32) {
    %c0_i32 = arith.constant 0 : i32
    %c0_i32_0 = arith.constant 0 : i32
    %c0_i32_1 = arith.constant 0 : i32
    return %c0_i32, %c0_i32_0 : i32, i32
  }
  func.func @transform_8(%arg0: i32) -> (i32, i32) {
    %c0_i32 = arith.constant 0 : i32
    %c0_i32_0 = arith.constant 0 : i32
    %c0_i32_1 = arith.constant 0 : i32
    return %c0_i32, %c0_i32_0 : i32, i32
  }
  func.func @transform_9(%arg0: i32) -> (i32, i32) {
    %c0_i32 = arith.constant 0 : i32
    %c0_i32_0 = arith.constant 0 : i32
    %c0_i32_1 = arith.constant 0 : i32
    return %c0_i32, %c0_i32_0 : i32, i32
  }
  func.func @transform_10(%arg0: i32) -> (i32, i32) {
    %c0_i32 = arith.constant 0 : i32
    %c0_i32_0 = arith.constant 0 : i32
    %c0_i32_1 = arith.constant 0 : i32
    return %c0_i32, %c0_i32_0 : i32, i32
  }
  func.func @transform_11(%arg0: i32) -> (i32, i32) {
    %c0_i32 = arith.constant 0 : i32
    %c0_i32_0 = arith.constant 0 : i32
    return %c0_i32, %arg0 : i32, i32
  }
}

</mosaic_0001>

<llo_original>
// kernel: tpu_custom_call.1
$region0: #{tpu_custom_call.1}
  #allocation0 [shape = 'u32[]', space=smem, size = 0x4, offset = 0x4, fixed_abs, tag = 'smem constant byte address 0x4 - core index']
  #allocation1 [shape = 'u32[144,128]{1,0:T(1,128)}', space=vmem, size = 0x12000, scoped, tag = 'internal scratch']
  #allocation2 [shape = 'f32[1,1]{1,0:T(1,128)S(6)}', space=smem, size = 0x200, scoped, tag = 'scoped memory for tpu_custom_call.1']
  #allocation3 [shape = 'f32[1,1]{1,0:T(1,128)S(6)}', space=smem, size = 0x200, scoped, tag = 'scoped memory for tpu_custom_call.1']
  %s0 = inlined_call_operand.vmem [shape: f32[8,8], index: 0, kind: input, shape index: {}]
  %s1 = inlined_call_operand.vmem [shape: f32[32,8], index: 1, kind: input, shape index: {}]
  %s2 = inlined_call_operand.vmem [shape: f32[8,1], index: 2, kind: input, shape index: {}]
  %s3 = inlined_call_operand.<no memory space> [shape: f32[1,1], index: 3, kind: input, shape index: {}]
  %s4 = inlined_call_operand.vmem [shape: f32[32,32], index: 4, kind: input, shape index: {}]
  %s5 = inlined_call_operand.vmem [shape: f32[32,8], index: 5, kind: input, shape index: {}]
  %s6 = inlined_call_operand.vmem [shape: f32[32,1], index: 6, kind: input, shape index: {}]
  %s7 = inlined_call_operand.vmem [shape: f32[16,32], index: 7, kind: input, shape index: {}]
  %s8 = inlined_call_operand.vmem [shape: f32[16,1], index: 8, kind: input, shape index: {}]
  %s9 = inlined_call_operand.vmem [shape: f32[16,1], index: 9, kind: input, shape index: {}]
  %s10 = inlined_call_operand.<no memory space> [shape: f32[1,1], index: 10, kind: input, shape index: {}]
  %s11 = inlined_call_operand.hbm [shape: f32[1,8], index: 11, kind: output, shape index: {}]
  %s12 = sld [smem:[#allocation0]]
  $region54: #{tpu_custom_call.1} parent=0
    _
  %s14 = ssub.s32 1, %s12
  %s15 = scalar_select 0, %s14, %s12
  %16 = sst [smem:[#allocation2]] %s3
  %17 = sst [smem:[#allocation3]] %s10
  $region1: #{tpu_custom_call.1} parent=0
    #allocation4 [shape = 'u8[512]{0}', space=vmem, size = 0x400, scoped, tag = 'output window, operand 0, single buffered']
    #allocation5 [shape = 's32[1]{0}', space=sflag, size = 0x4, scoped, tag = 'scoped memory for tpu_custom_call.1']
    %18 = vsyncpa [#allocation5], 0
    // Predicated region
    $region2: #{tpu_custom_call.1} parent=1 // pred_check
      _
    $region3: #{tpu_custom_call.1} parent=1 // pred_check_branch
      %20 = sbr.rel (0) target = $region5
    $region4: #{tpu_custom_call.1} parent=1 // pred_region
      _
    $region5: #{tpu_custom_call.1} parent=1 // pred_fallthru
      _
    // Predicated region
    $region6: #{tpu_custom_call.1} parent=1 // pred_check
      _
    $region7: #{tpu_custom_call.1} parent=1 // pred_check_branch
      %22 = sbr.rel (0) target = $region9
    $region8: #{tpu_custom_call.1} parent=1 // pred_region
      _
    $region9: #{tpu_custom_call.1} parent=1 // pred_fallthru
      _
    // Predicated region
    $region10: #{tpu_custom_call.1} parent=1 // pred_check
      _
    $region11: #{tpu_custom_call.1} parent=1 // pred_check_branch
      %24 = sbr.rel (0) target = $region13
    $region12: #{tpu_custom_call.1} parent=1 // pred_region
      _
    $region13: #{tpu_custom_call.1} parent=1 // pred_fallthru
      _
    // Predicated region
    $region14: #{tpu_custom_call.1} parent=1 // pred_check
      _
    $region15: #{tpu_custom_call.1} parent=1 // pred_check_branch
      %26 = sbr.rel (0) target = $region17
    $region16: #{tpu_custom_call.1} parent=1 // pred_region
      _
    $region17: #{tpu_custom_call.1} parent=1 // pred_fallthru
      _
    // Predicated region
    $region18: #{tpu_custom_call.1} parent=1 // pred_check
      _
    $region19: #{tpu_custom_call.1} parent=1 // pred_check_branch
      %28 = sbr.rel (0) target = $region21
    $region20: #{tpu_custom_call.1} parent=1 // pred_region
      _
    $region21: #{tpu_custom_call.1} parent=1 // pred_fallthru
      _
    // Predicated region
    $region22: #{tpu_custom_call.1} parent=1 // pred_check
      _
    $region23: #{tpu_custom_call.1} parent=1 // pred_check_branch
      %30 = sbr.rel (0) target = $region25
    $region24: #{tpu_custom_call.1} parent=1 // pred_region
      _
    $region25: #{tpu_custom_call.1} parent=1 // pred_fallthru
      _
    // Predicated region
    $region26: #{tpu_custom_call.1} parent=1 // pred_check
      _
    $region27: #{tpu_custom_call.1} parent=1 // pred_check_branch
      %32 = sbr.rel (0) target = $region29
    $region28: #{tpu_custom_call.1} parent=1 // pred_region
      _
    $region29: #{tpu_custom_call.1} parent=1 // pred_fallthru
      _
    // Predicated region
    $region30: #{tpu_custom_call.1} parent=1 // pred_check
      _
    $region31: #{tpu_custom_call.1} parent=1 // pred_check_branch
      %34 = sbr.rel (0) target = $region33
    $region32: #{tpu_custom_call.1} parent=1 // pred_region
      _
    $region33: #{tpu_custom_call.1} parent=1 // pred_fallthru
      _
    // Predicated region
    $region34: #{tpu_custom_call.1} parent=1 // pred_check
      _
    $region35: #{tpu_custom_call.1} parent=1 // pred_check_branch
      %36 = sbr.rel (0) target = $region37
    $region36: #{tpu_custom_call.1} parent=1 // pred_region
      _
    $region37: #{tpu_custom_call.1} parent=1 // pred_fallthru
      _
    // Predicated region
    $region38: #{tpu_custom_call.1} parent=1 // pred_check
      _
    $region39: #{tpu_custom_call.1} parent=1 // pred_check_branch
      %38 = sbr.rel (0) target = $region41
    $region40: #{tpu_custom_call.1} parent=1 // pred_region
      _
    $region41: #{tpu_custom_call.1} parent=1 // pred_fallthru
      _
    // Predicated region
    $region42: #{tpu_custom_call.1} parent=1 // pred_check
      _
    $region43: #{tpu_custom_call.1} parent=1 // pred_check_branch
      %40 = sbr.rel (0) target = $region45
    $region44: #{tpu_custom_call.1} parent=1 // pred_region
      _
    $region45: #{tpu_custom_call.1} parent=1 // pred_fallthru
      _
    %v41 = vld [vmem:[%s0] sm:$0xff]
    %v42 = vld [vmem:[%s1] sm:$0xff]
    %v43 = vld [vmem:[%s1 + $0x8] sm:$0xff]
    %v44 = vld [vmem:[%s1 + $0x10] sm:$0xff]
    %v45 = vld [vmem:[%s1 + $0x18] sm:$0xff]
    %v46 = vld [vmem:[%s4] sm:$0xff]
    %v47 = vld [vmem:[%s4 + $0x8] sm:$0xff]
    %v48 = vld [vmem:[%s4 + $0x10] sm:$0xff]
    %v49 = vld [vmem:[%s4 + $0x18] sm:$0xff]
    %v50 = vld [vmem:[%s5] sm:$0xff]
    %v51 = vld [vmem:[%s5 + $0x8] sm:$0xff]
    %v52 = vld [vmem:[%s5 + $0x10] sm:$0xff]
    %v53 = vld [vmem:[%s5 + $0x18] sm:$0xff]
    %vm54 = vcmask 64512
    %v56 = vsel %vm54, %v50, 0
    %v59 = vsel %vm54, %v51, 0
    %v62 = vsel %vm54, %v52, 0
    %v65 = vsel %vm54, %v53, 0
    %67 = vmatprep.subr.mxu0 0.0
    %68 = vmatpush1.msra.mxu0 %v41
    %69 = vmatprep.subr.mxu0 0.0
    %70 = vmatpush1.msra.mxu0 0.0
    %71 = vmatprep.subr.mxu0 0.0
    %72 = vmatpush1.msra.mxu0 0.0
    %73 = vmatprep.subr.mxu0 0.0
    %74 = vmatpush1.msra.mxu0 0.0
    %75 = vmatprep.subr.mxu0 0.0
    %76 = vmatpush1.msra.mxu0 0.0
    %77 = vmatprep.subr.mxu0 0.0
    %78 = vmatpush1.msra.mxu0 0.0
    %79 = vmatprep.subr.mxu0 0.0
    %80 = vmatpush1.msra.mxu0 0.0
    %81 = vmatprep.subr.mxu0 0.0
    %82 = vmatpush1.msra.mxu0 0.0
    %83 = vmatprep.subr.mxu0 0.0
    %84 = vmatpush1.msra.mxu0 0.0
    %85 = vmatprep.subr.mxu0 0.0
    %86 = vmatpush1.msra.mxu0 0.0
    %87 = vmatprep.subr.mxu0 0.0
    %88 = vmatpush1.msra.mxu0 0.0
    %89 = vmatprep.subr.mxu0 0.0
    %90 = vmatpush1.msra.mxu0 0.0
    %91 = vmatprep.subr.mxu0 0.0
    %92 = vmatpush1.msra.mxu0 0.0
    %93 = vmatprep.subr.mxu0 0.0
    %94 = vmatpush1.msra.mxu0 0.0
    %95 = vmatprep.subr.mxu0 0.0
    %96 = vmatpush1.msra.mxu0 0.0
    %97 = vmatprep.subr.mxu0 0.0
    %98 = vmatpush1.msra.mxu0 0.0
    %99 = vmatprep.subr.mxu0 0.0
    %100 = vmatpush1.msra.mxu0 0.0
    %101 = vmatprep.subr.mxu0 0.0
    %102 = vmatpush1.msra.mxu0 0.0
    %103 = vmatprep.subr.mxu0 0.0
    %104 = vmatpush1.msra.mxu0 0.0
    %105 = vmatprep.subr.mxu0 0.0
    %106 = vmatpush1.msra.mxu0 0.0
    %107 = vmatprep.subr.mxu0 0.0
    %108 = vmatpush1.msra.mxu0 0.0
    %109 = vmatprep.subr.mxu0 0.0
    %110 = vmatpush1.msra.mxu0 0.0
    %111 = vmatprep.subr.mxu0 0.0
    %112 = vmatpush1.msra.mxu0 0.0
    %113 = vmatprep.subr.mxu0 0.0
    %114 = vmatpush1.msra.mxu0 0.0
    %115 = vmatprep.subr.mxu0 0.0
    %116 = vmatpush1.msra.mxu0 0.0
    %117 = vmatprep.subr.mxu0 0.0
    %118 = vmatpush1.msra.mxu0 0.0
    %119 = vmatprep.subr.mxu0 0.0
    %120 = vmatpush1.msra.mxu0 0.0
    %121 = vmatprep.subr.mxu0 0.0
    %122 = vmatpush1.msra.mxu0 0.0
    %123 = vmatprep.subr.mxu0 0.0
    %124 = vmatpush1.msra.mxu0 0.0
    %125 = vmatprep.subr.mxu0 0.0
    %126 = vmatpush1.msra.mxu0 0.0
    %127 = vmatprep.subr.mxu0 0.0
    %128 = vmatpush1.msra.mxu0 0.0
    %129 = vmatprep.subr.mxu0 0.0
    %130 = vmatpush1.msra.mxu0 0.0
    %131 = vmatprep.mubr.f32.mxu0 0.0
    %132 = vmatmul.mubr.f32.gmra.mrb[0].mxu0 %v56
    %v133 = vpop.f32.mrb[0].mxu0
    %v134 = vadd.f32 0.0, %v133
    %v135 = vpop.f32.mrb[0].mxu0
    %136 = vmatprep.mubr.f32.mxu0 0.0
    %137 = vmatmul.mubr.f32.gmra.mrb[0].mxu0 %v59
    %v138 = vpop.f32.mrb[0].mxu0
    %v139 = vadd.f32 0.0, %v138
    %v140 = vpop.f32.mrb[0].mxu0
    %141 = vmatprep.mubr.f32.mxu0 0.0
    %142 = vmatmul.mubr.f32.gmra.mrb[0].mxu0 %v62
    %v143 = vpop.f32.mrb[0].mxu0
    %v144 = vadd.f32 0.0, %v143
    %v145 = vpop.f32.mrb[0].mxu0
    %146 = vmatprep.mubr.f32.mxu0 0.0
    %147 = vmatmul.mubr.f32.gmra.mrb[0].mxu0 %v65
    %v148 = vpop.f32.mrb[0].mxu0
    %v149 = vadd.f32 0.0, %v148
    %v150 = vpop.f32.mrb[0].mxu0
    %151 = vdwg.mxu0
    %vm152 = vcmask 261120
    %v154 = vsel %vm152, %v46, 0
    %v157 = vsel %vm152, %v47, 0
    %v160 = vsel %vm152, %v48, 0
    %v163 = vsel %vm152, %v49, 0
    %165 = vmatprep.subr.mxu0 0.0
    %166 = vmatpush1.msra.mxu0 %v42
    %167 = vmatprep.subr.mxu0 0.0
    %168 = vmatpush1.msra.mxu0 %v43
    %169 = vmatprep.subr.mxu0 0.0
    %170 = vmatpush1.msra.mxu0 %v44
    %171 = vmatprep.subr.mxu0 0.0
    %172 = vmatpush1.msra.mxu0 %v45
    %173 = vmatprep.subr.mxu0 0.0
    %174 = vmatpush1.msra.mxu0 0.0
    %175 = vmatprep.subr.mxu0 0.0
    %176 = vmatpush1.msra.mxu0 0.0
    %177 = vmatprep.subr.mxu0 0.0
    %178 = vmatpush1.msra.mxu0 0.0
    %179 = vmatprep.subr.mxu0 0.0
    %180 = vmatpush1.msra.mxu0 0.0
    %181 = vmatprep.subr.mxu0 0.0
    %182 = vmatpush1.msra.mxu0 0.0
    %183 = vmatprep.subr.mxu0 0.0
    %184 = vmatpush1.msra.mxu0 0.0
    %185 = vmatprep.subr.mxu0 0.0
    %186 = vmatpush1.msra.mxu0 0.0
    %187 = vmatprep.subr.mxu0 0.0
    %188 = vmatpush1.msra.mxu0 0.0
    %189 = vmatprep.subr.mxu0 0.0
    %190 = vmatpush1.msra.mxu0 0.0
    %191 = vmatprep.subr.mxu0 0.0
    %192 = vmatpush1.msra.mxu0 0.0
    %193 = vmatprep.subr.mxu0 0.0
    %194 = vmatpush1.msra.mxu0 0.0
    %195 = vmatprep.subr.mxu0 0.0
    %196 = vmatpush1.msra.mxu0 0.0
    %197 = vmatprep.subr.mxu0 0.0
    %198 = vmatpush1.msra.mxu0 0.0
    %199 = vmatprep.subr.mxu0 0.0
    %200 = vmatpush1.msra.mxu0 0.0
    %201 = vmatprep.subr.mxu0 0.0
    %202 = vmatpush1.msra.mxu0 0.0
    %203 = vmatprep.subr.mxu0 0.0
    %204 = vmatpush1.msra.mxu0 0.0
    %205 = vmatprep.subr.mxu0 0.0
    %206 = vmatpush1.msra.mxu0 0.0
    %207 = vmatprep.subr.mxu0 0.0
    %208 = vmatpush1.msra.mxu0 0.0
    %209 = vmatprep.subr.mxu0 0.0
    %210 = vmatpush1.msra.mxu0 0.0
    %211 = vmatprep.subr.mxu0 0.0
    %212 = vmatpush1.msra.mxu0 0.0
    %213 = vmatprep.subr.mxu0 0.0
    %214 = vmatpush1.msra.mxu0 0.0
    %215 = vmatprep.subr.mxu0 0.0
    %216 = vmatpush1.msra.mxu0 0.0
    %217 = vmatprep.subr.mxu0 0.0
    %218 = vmatpush1.msra.mxu0 0.0
    %219 = vmatprep.subr.mxu0 0.0
    %220 = vmatpush1.msra.mxu0 0.0
    %221 = vmatprep.subr.mxu0 0.0
    %222 = vmatpush1.msra.mxu0 0.0
    %223 = vmatprep.subr.mxu0 0.0
    %224 = vmatpush1.msra.mxu0 0.0
    %225 = vmatprep.subr.mxu0 0.0
    %226 = vmatpush1.msra.mxu0 0.0
    %227 = vmatprep.subr.mxu0 0.0
    %228 = vmatpush1.msra.mxu0 0.0
    %229 = vmatprep.mubr.f32.mxu0 0.0
    %230 = vmatmul.mubr.f32.gmra.mrb[0].mxu0 %v154
    %v231 = vpop.f32.mrb[0].mxu0
    %v232 = vadd.f32 %v134, %v231
    %v233 = vpop.f32.mrb[0].mxu0
    %234 = vmatprep.mubr.f32.mxu0 0.0
    %235 = vmatmul.mubr.f32.gmra.mrb[0].mxu0 %v157
    %v236 = vpop.f32.mrb[0].mxu0
    %v237 = vadd.f32 %v139, %v236
    %v238 = vpop.f32.mrb[0].mxu0
    %239 = vmatprep.mubr.f32.mxu0 0.0
    %240 = vmatmul.mubr.f32.gmra.mrb[0].mxu0 %v160
    %v241 = vpop.f32.mrb[0].mxu0
    %v242 = vadd.f32 %v144, %v241
    %v243 = vpop.f32.mrb[0].mxu0
    %244 = vmatprep.mubr.f32.mxu0 0.0
    %245 = vmatmul.mubr.f32.gmra.mrb[0].mxu0 %v163
    %v246 = vpop.f32.mrb[0].mxu0
    %v247 = vadd.f32 %v149, %v246
    %v248 = vpop.f32.mrb[0].mxu0
    %249 = vdwg.mxu0
    %v250 = vld [vmem:[%s6] sm:$0xff]
    %v251 = vld [vmem:[%s6 + $0x8] sm:$0xff]
    %v252 = vld [vmem:[%s6 + $0x10] sm:$0xff]
    %v253 = vld [vmem:[%s6 + $0x18] sm:$0xff]
    %255 = vset.pattern.permute.xlu0 0
    %256 = vperm.xlu0 %255, %v250
    %v257 = vpop.permute.xlu0 %256
    %260 = vset.pattern.permute.xlu0 0
    %261 = vperm.xlu0 %260, %v251
    %v262 = vpop.permute.xlu0 %261
    %265 = vset.pattern.permute.xlu0 0
    %266 = vperm.xlu0 %265, %v252
    %v267 = vpop.permute.xlu0 %266
    %270 = vset.pattern.permute.xlu0 0
    %271 = vperm.xlu0 %270, %v253
    %v272 = vpop.permute.xlu0 %271
    %v274 = vadd.f32 %v232, %v257
    %v275 = vadd.f32 %v237, %v262
    %v276 = vadd.f32 %v242, %v267
    %v277 = vadd.f32 %v247, %v272
    %v278 = vmax.f32 %v274, 0.0
    %v279 = vmax.f32 %v275, 0.0
    %v280 = vmax.f32 %v276, 0.0
    %v281 = vmax.f32 %v277, 0.0
    %v282 = vld [vmem:[%s7] sm:$0xff]
    %v283 = vld [vmem:[%s7 + $0x8] sm:$0xff]
    %v284 = vld [vmem:[%s8] sm:$0xff]
    %v285 = vld [vmem:[%s8 + $0x8] sm:$0xff]
    %287 = vset.pattern.permute.xlu0 0
    %288 = vperm.xlu0 %287, %v284
    %v289 = vpop.permute.xlu0 %288
    %292 = vset.pattern.permute.xlu0 0
    %293 = vperm.xlu0 %292, %v285
    %v294 = vpop.permute.xlu0 %293
    %v297 = vsel %vm152, %v282, 0
    %v300 = vsel %vm152, %v283, 0
    %302 = vmatprep.subr.mxu0 0.0
    %303 = vmatpush1.msra.mxu0 %v278
    %304 = vmatprep.subr.mxu0 0.0
    %305 = vmatpush1.msra.mxu0 %v279
    %306 = vmatprep.subr.mxu0 0.0
    %307 = vmatpush1.msra.mxu0 %v280
    %308 = vmatprep.subr.mxu0 0.0
    %309 = vmatpush1.msra.mxu0 %v281
    %310 = vmatprep.subr.mxu0 0.0
    %311 = vmatpush1.msra.mxu0 0.0
    %312 = vmatprep.subr.mxu0 0.0
    %313 = vmatpush1.msra.mxu0 0.0
    %314 = vmatprep.subr.mxu0 0.0
    %315 = vmatpush1.msra.mxu0 0.0
    %316 = vmatprep.subr.mxu0 0.0
    %317 = vmatpush1.msra.mxu0 0.0
    %318 = vmatprep.subr.mxu0 0.0
    %319 = vmatpush1.msra.mxu0 0.0
    %320 = vmatprep.subr.mxu0 0.0
    %321 = vmatpush1.msra.mxu0 0.0
    %322 = vmatprep.subr.mxu0 0.0
    %323 = vmatpush1.msra.mxu0 0.0
    %324 = vmatprep.subr.mxu0 0.0
    %325 = vmatpush1.msra.mxu0 0.0
    %326 = vmatprep.subr.mxu0 0.0
    %327 = vmatpush1.msra.mxu0 0.0
    %328 = vmatprep.subr.mxu0 0.0
    %329 = vmatpush1.msra.mxu0 0.0
    %330 = vmatprep.subr.mxu0 0.0
    %331 = vmatpush1.msra.mxu0 0.0
    %332 = vmatprep.subr.mxu0 0.0
    %333 = vmatpush1.msra.mxu0 0.0
    %334 = vmatprep.subr.mxu0 0.0
    %335 = vmatpush1.msra.mxu0 0.0
    %336 = vmatprep.subr.mxu0 0.0
    %337 = vmatpush1.msra.mxu0 0.0
    %338 = vmatprep.subr.mxu0 0.0
    %339 = vmatpush1.msra.mxu0 0.0
    %340 = vmatprep.subr.mxu0 0.0
    %341 = vmatpush1.msra.mxu0 0.0
    %342 = vmatprep.subr.mxu0 0.0
    %343 = vmatpush1.msra.mxu0 0.0
    %344 = vmatprep.subr.mxu0 0.0
    %345 = vmatpush1.msra.mxu0 0.0
    %346 = vmatprep.subr.mxu0 0.0
    %347 = vmatpush1.msra.mxu0 0.0
    %348 = vmatprep.subr.mxu0 0.0
    %349 = vmatpush1.msra.mxu0 0.0
    %350 = vmatprep.subr.mxu0 0.0
    %351 = vmatpush1.msra.mxu0 0.0
    %352 = vmatprep.subr.mxu0 0.0
    %353 = vmatpush1.msra.mxu0 0.0
    %354 = vmatprep.subr.mxu0 0.0
    %355 = vmatpush1.msra.mxu0 0.0
    %356 = vmatprep.subr.mxu0 0.0
    %357 = vmatpush1.msra.mxu0 0.0
    %358 = vmatprep.subr.mxu0 0.0
    %359 = vmatpush1.msra.mxu0 0.0
    %360 = vmatprep.subr.mxu0 0.0
    %361 = vmatpush1.msra.mxu0 0.0
    %362 = vmatprep.subr.mxu0 0.0
    %363 = vmatpush1.msra.mxu0 0.0
    %364 = vmatprep.subr.mxu0 0.0
    %365 = vmatpush1.msra.mxu0 0.0
    %366 = vmatprep.mubr.f32.mxu0 0.0
    %367 = vmatmul.mubr.f32.gmra.mrb[0].mxu0 %v297
    %v368 = vpop.f32.mrb[0].mxu0
    %v369 = vadd.f32 %v289, %v368
    %v370 = vpop.f32.mrb[0].mxu0
    %371 = vmatprep.mubr.f32.mxu0 0.0
    %372 = vmatmul.mubr.f32.gmra.mrb[0].mxu0 %v300
    %v373 = vpop.f32.mrb[0].mxu0
    %v374 = vadd.f32 %v294, %v373
    %v375 = vpop.f32.mrb[0].mxu0
    %376 = vdwg.mxu0
    %v377 = vmax.f32 %v369, 0.0
    %v378 = vmax.f32 %v374, 0.0
    %v379 = vld [vmem:[%s9] sm:$0xff]
    %v380 = vld [vmem:[%s9 + $0x8] sm:$0xff]
    %382 = vset.pattern.permute.xlu0 0
    %383 = vperm.xlu0 %382, %v379
    %v384 = vpop.permute.xlu0 %383
    %387 = vset.pattern.permute.xlu0 0
    %388 = vperm.xlu0 %387, %v380
    %v389 = vpop.permute.xlu0 %388
    %v391 = vmul.f32 %v377, %v384
    %v392 = vmul.f32 %v378, %v389
    %v393 = vsel %vm54, %v391, 0.0
    %v394 = vsel %vm54, %v392, 0.0
    %v395 = vadd.f32 %v393, %v394
    %v396 = vrot.slane %v395, 4
    %v397 = vadd.f32 %v395, %v396
    %v398 = vrot.slane %v397, 2
    %v399 = vadd.f32 %v397, %v398
    %v400 = vrot.slane %v399, 1
    %v401 = vadd.f32 %v399, %v400
    %s402 = sld [smem:[#allocation3]]
    %v403 = vstv %s402
    %v404 = vadd.f32 %v401, %v403
    %v405 = vld [vmem:[%s2] sm:$0xff]
    %407 = vset.pattern.permute.xlu0 0
    %408 = vperm.xlu0 %407, %v405
    %v409 = vpop.permute.xlu0 %408
    %v411 = vmul.f32 %v41, %v409
    %v412 = vsel %vm54, %v411, 0.0
    %v413 = vrot.slane %v412, 4
    %v414 = vadd.f32 %v412, %v413
    %v415 = vrot.slane %v414, 2
    %v416 = vadd.f32 %v414, %v415
    %v417 = vrot.slane %v416, 1
    %v418 = vadd.f32 %v416, %v417
    %s419 = sld [smem:[#allocation2]]
    %v420 = vstv %s419
    %v421 = vadd.f32 %v418, %v420
    %v422 = vmax.f32 %v421, 0.0
    %v423 = vadd.f32 %v422, %v404
    %v424 = vmul.f32 %v423, 0.5
    %v425 = vxor.u32 %v424, 2147483648
    %v426 = vmul.f32 %v425, 1.442695
    %v427 = vpow.pop %v426
    %v428 = vadd.f32 %v427, 1.0
    %v429 = vrcp.pop %v428
    %v430 = vmul.f32 1.0, %v429
    %vm431 = vcmask 57344
    %432 = vst.msk [vmem:[#allocation4] sm:$0x1] %vm431, %v430
    // Predicated region
    $region46: #{tpu_custom_call.1} parent=1 // pred_check
      _
    $region47: #{tpu_custom_call.1} parent=1 // pred_check_branch
      %434 = sbr.rel (0) target = $region49
    $region48: #{tpu_custom_call.1} parent=1 // pred_region
      %s436 = ssub.s32 16, 16
      %437 = vsyncadd [#allocation5], %s436
      %s439 = sshll.u32 [#allocation4], 4
      %s440 = int_to_ptr.vmem [resolvable:$true] %s439
      %442 = dma.vmem_to_hbm [thread:$0]  %s440, 16, %s11, [#allocation5]
    $region49: #{tpu_custom_call.1} parent=1 // pred_fallthru
      _
    // Predicated region
    $region50: #{tpu_custom_call.1} parent=1 // pred_check
      _
    $region51: #{tpu_custom_call.1} parent=1 // pred_check_branch
      %444 = sbr.rel (0) target = $region53
    $region52: #{tpu_custom_call.1} parent=1 // pred_region
      %445 = dma.done [#allocation5], 16
    $region53: #{tpu_custom_call.1} parent=1 // pred_fallthru
      _
    %446 = vsyncpa [#allocation5], 1

</llo_original>
